<compile_context>
chip_gen: v5e
topology: v5e:2x2
jax: 0.10.0
libtpu: 0.0.40
codegen_flags: <defaults>
</compile_context>

<pallas_src>
import functools

import jax
import jax.numpy as jnp
from jax.experimental import pallas as pl
from jax.experimental.pallas import tpu as pltpu

_VMEM_BUDGET_BYTES = 40 * 1024 * 1024   # working-set target (v7x has 64 MiB)
_VMEM_LIMIT_BYTES = 48 * 1024 * 1024    # scoped limit passed to Mosaic


def _round_up(x, m):
    return (x + m - 1) // m * m


def _padded_bytes(rows, cols, itemsize):
    """VMEM footprint of a (rows, cols) block after (8, 128) tile padding."""
    return _round_up(max(rows, 1), 8) * _round_up(max(cols, 1), 128) * itemsize


def _vmem_bytes_estimate(tb, d_emb, table_itemsize, resident_arrays):
    """Rough VMEM working-set estimate for one grid step (with double buffers)."""
    total = 2 * 2 * _padded_bytes(tb, d_emb, table_itemsize)  # u/i blocks, 2 bufs
    total += 2 * _padded_bytes(tb, 1, 4)                      # (tb, 1) out block
    total += sum(2 * _padded_bytes(a.shape[0], a.shape[1], a.dtype.itemsize)
                 for a in resident_arrays)                    # resident weights
    total += 4 * _padded_bytes(tb, d_emb, 4)                  # traced f32 temps
    return total


def make_ncf_kernel(num_layers, d_mlp, mxu_dtype):
    """NCF (NeuMF) forward kernel for a fixed number of MLP layers.

    Inputs per grid step:
      u_emb (tb, d_mlp+factors), i_emb (tb, d_mlp+factors)   -- batch blocked
      w1_user (d_mlp, d_mlp), w1_item (d_mlp, d_mlp), b1 (1, d_mlp)
      (w_l, b_l) for l = 2..num_layers
      wf_mlp_row (1, factors), wf_gmf_row (1, factors), b_final (1, 1)
    Output: score block (tb, 1) in f32.
    """
    n_hidden = 2 * (num_layers - 1)

    def kernel(u_ref, i_ref, w1u_ref, w1i_ref, b1_ref, *rest):
        hidden_refs = rest[:n_hidden]
        wf_mlp_ref, wf_gmf_ref, bf_ref, out_ref = rest[n_hidden:]

        u = u_ref[...]
        i = i_ref[...]
        # Static column split of the merged embedding block (MLP | GMF).
        u_mlp = u[:, :d_mlp].astype(mxu_dtype)
        i_mlp = i[:, :d_mlp].astype(mxu_dtype)
        u_gmf = u[:, d_mlp:].astype(jnp.float32)
        i_gmf = i[:, d_mlp:].astype(jnp.float32)

        # --- MLP tower. Layer 1 in split-K form == concat([u, i]) @ W1 + b1.
        x = (jnp.dot(u_mlp, w1u_ref[...].astype(mxu_dtype),
                     preferred_element_type=jnp.float32)
             + jnp.dot(i_mlp, w1i_ref[...].astype(mxu_dtype),
                       preferred_element_type=jnp.float32)
             + b1_ref[...].astype(jnp.float32))
        x = jnp.maximum(x, 0.0)  # ReLU

        for l in range(num_layers - 1):
            w = hidden_refs[2 * l][...].astype(mxu_dtype)
            b = hidden_refs[2 * l + 1][...].astype(jnp.float32)
            x = jnp.dot(x.astype(mxu_dtype), w,
                        preferred_element_type=jnp.float32)
            x = jnp.maximum(x + b, 0.0)

        # --- GMF tower: elementwise product, kept f32 on every generation.
        gmf = u_gmf * i_gmf

        # --- Final 1-wide projection as VPU multiply + lane reduction
        #     (no 1-column MXU matmul): == concat([x, gmf]) @ final_w + final_b.
        wf_mlp = wf_mlp_ref[...].astype(jnp.float32)   # (1, factors)
        wf_gmf = wf_gmf_ref[...].astype(jnp.float32)   # (1, factors)
        score = jnp.sum(x * wf_mlp + gmf * wf_gmf, axis=-1, keepdims=True)
        out_ref[...] = (score + bf_ref[...].astype(jnp.float32)
                        ).astype(out_ref.dtype)

    return kernel


def ncf_forward(user, item, params, *, factors, layers, block_rows=2048,
                mxu_dtype=jnp.bfloat16):
    """NeuMF-end forward: merged-table gathers in JAX glue, dense tower in Pallas."""
    d_mlp = factors * 2 ** (layers - 1)
    d_emb = d_mlp + factors

    # ---- weights, split so the kernel never concatenates along the lane axis.
    w1 = params["mlp_w"][0]                       # [2*d_mlp, d_mlp] (pre-transposed)
    w1_u, w1_i = w1[:d_mlp], w1[d_mlp:]
    b1 = params["mlp_b"][0]                       # [1, d_mlp]
    wf = params["final_w"]                        # [2*factors, 1]
    wf_mlp_row = wf[:factors].reshape(1, factors)
    wf_gmf_row = wf[factors:].reshape(1, factors)
    bf = params["final_b"]                        # [1, 1]

    weight_inputs = [w1_u, w1_i, b1]
    for l in range(1, layers):
        weight_inputs.append(params["mlp_w"][l])  # [in, out] (pre-transposed)
        weight_inputs.append(params["mlp_b"][l])  # [1, out]
    weight_inputs += [wf_mlp_row, wf_gmf_row, bf]

    # ---- batch-tile sizing.
    B = user.shape[0]
    bp0 = _round_up(max(B, 1), 16)                # 16-row multiple (f32 & bf16 tiles)
    tb = min(_round_up(block_rows, 16), bp0)
    # v7x has 2 TensorCores: when the batch allows, guarantee >= 2 grid steps so
    # the "parallel" batch axis actually feeds both cores. No-op on v5e/v6e.
    if bp0 >= 32 and bp0 // tb < 2:
        tb = _round_up(pl.cdiv(bp0, 2), 16)
    table_itemsize = jnp.dtype(params["embed_user"].dtype).itemsize
    # Keep the double-buffered working set under the budget (sized for v7x 64 MiB).
    while tb > 16 and _vmem_bytes_estimate(tb, d_emb, table_itemsize,
                                           weight_inputs) > _VMEM_BUDGET_BYTES:
        tb = max(16, _round_up(tb // 2, 16))
    bp = _round_up(bp0, tb)
    pad = bp - B
    if pad:
        # Padded rows gather row 0 and are sliced off after the kernel.
        user = jnp.pad(user, (0, pad))
        item = jnp.pad(item, (0, pad))

    # ---- glue: ONE merged-table gather per side (MLP and GMF columns together).
    # NOTE: jnp.take clips OOB indices instead of erroring like torch nn.Embedding.
    u_emb = jnp.take(params["embed_user"], user, axis=0)   # (bp, d_mlp+factors)
    i_emb = jnp.take(params["embed_item"], item, axis=0)

    inputs = [u_emb, i_emb] + weight_inputs

    def batch_spec(a):
        # Batch-blocked, auto double-buffered by the Pallas pipeline.
        # (If an xprof trace on v5e shows exposed DMA, add
        #  pipeline_mode=pl.Buffered(3) here.)
        return pl.BlockSpec((tb, a.shape[1]), lambda i: (i, 0))

    def resident_spec(a):
        # Full-extent block + constant index_map -> fetched once, VMEM-resident.
        return pl.BlockSpec(a.shape, lambda i: (0, 0))

    in_specs = ([batch_spec(u_emb), batch_spec(i_emb)]
                + [resident_spec(a) for a in weight_inputs])

    out = pl.pallas_call(
        make_ncf_kernel(layers, d_mlp, mxu_dtype),
        out_shape=jax.ShapeDtypeStruct((bp, 1), jnp.float32),
        grid=(bp // tb,),
        in_specs=in_specs,
        # (tb, 1) output: <1% of HBM traffic here; a lane-dense (1, tb) layout
        # is a documented low-priority follow-up if profiles show a store gap.
        out_specs=pl.BlockSpec((tb, 1), lambda i: (i, 0)),
        compiler_params=pltpu.CompilerParams(
            dimension_semantics=("parallel",),        # batch axis -> both TCs on v7x
            vmem_limit_bytes=_VMEM_LIMIT_BYTES,       # fits every generation
        ),
    )(*inputs)

    return out[:B, 0]  # matches torch's score.view(-1)


def init_params(key, user_num, item_num, factors, layers,
                table_dtype=jnp.bfloat16, weight_dtype=jnp.float32):
    """Parameter init mirroring NCF._init_weight_ shapes (merged table layout)."""
    std = 0.01
    d_mlp = factors * 2 ** (layers - 1)
    keys = jax.random.split(key, 6 + layers)

    def nrm(k, shape, dt):
        return (std * jax.random.normal(k, shape, jnp.float32)).astype(dt)

    # Merged per-side tables: columns [:d_mlp] = MLP embedding, [d_mlp:] = GMF.
    embed_user = jnp.concatenate(
        [nrm(keys[0], (user_num, d_mlp), jnp.float32),
         nrm(keys[1], (user_num, factors), jnp.float32)], axis=1).astype(table_dtype)
    embed_item = jnp.concatenate(
        [nrm(keys[2], (item_num, d_mlp), jnp.float32),
         nrm(keys[3], (item_num, factors), jnp.float32)], axis=1).astype(table_dtype)

    params = {"embed_user": embed_user, "embed_item": embed_item,
              "mlp_w": [], "mlp_b": []}
    for i in range(layers):
        in_size = factors * 2 ** (layers - i)
        out_size = in_size // 2
        # stored pre-transposed: [in, out]
        params["mlp_w"].append(nrm(keys[4 + i], (in_size, out_size), weight_dtype))
        params["mlp_b"].append(jnp.zeros((1, out_size), jnp.float32))
    params["final_w"] = nrm(keys[4 + layers], (2 * factors, 1), weight_dtype)
    params["final_b"] = jnp.zeros((1, 1), jnp.float32)
    return params


def ncf_reference(user, item, params, *, factors, layers):
    """Plain-JAX f32 reference (concat form) for correctness checking."""
    d_mlp = factors * 2 ** (layers - 1)
    u = jnp.take(params["embed_user"], user, axis=0).astype(jnp.float32)
    it = jnp.take(params["embed_item"], item, axis=0).astype(jnp.float32)
    x = jnp.concatenate([u[:, :d_mlp], it[:, :d_mlp]], axis=-1)
    for l in range(layers):
        w = params["mlp_w"][l].astype(jnp.float32)
        b = params["mlp_b"][l].astype(jnp.float32)
        x = jnp.maximum(x @ w + b, 0.0)
    gmf = u[:, d_mlp:] * it[:, d_mlp:]
    feat = jnp.concatenate([x, gmf], axis=-1)
    wf = params["final_w"].astype(jnp.float32)
    bf = params["final_b"].astype(jnp.float32)
    return (feat @ wf + bf).reshape(-1)


if __name__ == "__main__":
    # Small config: NeuMF-end, factors=16, layers=3.
    user_num, item_num = 50, 40
    factors, layers = 16, 3
    batch = 8

    key = jax.random.PRNGKey(0)
    k_params, k_user, k_item = jax.random.split(key, 3)
    user = jax.random.randint(k_user, (batch,), 0, user_num, dtype=jnp.int32)
    item = jax.random.randint(k_item, (batch,), 0, item_num, dtype=jnp.int32)

    # --- f32 storage + f32 MXU path: tight check vs the plain-JAX reference.
    params_f32 = init_params(k_params, user_num, item_num, factors, layers,
                             table_dtype=jnp.float32)
    fwd_f32 = jax.jit(functools.partial(ncf_forward, factors=factors,
                                        layers=layers, mxu_dtype=jnp.float32))
    score_f32 = fwd_f32(user, item, params_f32)
    jax.block_until_ready(score_f32)
    ref = ncf_reference(user, item, params_f32, factors=factors, layers=layers)
    assert score_f32.shape == (batch,)
    assert jnp.allclose(score_f32, ref, atol=1e-5, rtol=1e-5), (score_f32, ref)

    # --- default perf path: bf16 tables + bf16 MXU operands, f32 accumulation.
    params = init_params(k_params, user_num, item_num, factors, layers)
    fwd = jax.jit(functools.partial(ncf_forward, factors=factors, layers=layers))
    score = fwd(user, item, params)
    jax.block_until_ready(score)
    assert score.shape == (batch,)
    assert bool(jnp.all(jnp.isfinite(score)))
    assert jnp.allclose(score, ref, atol=2e-4), (score, ref)

    # --- larger batch: exercises a multi-step grid (>= 2 "parallel" tiles).
    big_batch = 4096
    kb_user, kb_item = jax.random.split(jax.random.PRNGKey(1), 2)
    big_user = jax.random.randint(kb_user, (big_batch,), 0, user_num, jnp.int32)
    big_item = jax.random.randint(kb_item, (big_batch,), 0, item_num, jnp.int32)
    big_score = fwd(big_user, big_item, params)
    jax.block_until_ready(big_score)
    big_ref = ncf_reference(big_user, big_item, params, factors=factors,
                            layers=layers)
    assert big_score.shape == (big_batch,)
    assert jnp.allclose(big_score, big_ref, atol=2e-4), "large-batch mismatch"

    print("KERNEL_OK")
</pallas_src>

<mosaic_0001>
module attributes {stable_mosaic.version = 11 : i64} {
  func.func @kernel(%arg0: i32, %arg1: memref<16x80xf32, #tpu.memory_space<vmem>>, %arg2: memref<16x80xf32, #tpu.memory_space<vmem>>, %arg3: memref<64x64xf32, #tpu.memory_space<vmem>>, %arg4: memref<64x64xf32, #tpu.memory_space<vmem>>, %arg5: memref<1x64xf32, #tpu.memory_space<vmem>>, %arg6: memref<64x32xf32, #tpu.memory_space<vmem>>, %arg7: memref<1x32xf32, #tpu.memory_space<vmem>>, %arg8: memref<32x16xf32, #tpu.memory_space<vmem>>, %arg9: memref<1x16xf32, #tpu.memory_space<vmem>>, %arg10: memref<1x16xf32, #tpu.memory_space<vmem>>, %arg11: memref<1x16xf32, #tpu.memory_space<vmem>>, %arg12: memref<1x1xf32, #tpu.memory_space<vmem>>, %arg13: memref<16x1xf32, #tpu.memory_space<vmem>>) attributes {dimension_semantics = [#tpu.dimension_semantics<parallel>], iteration_bounds = array<i64: 1>, scalar_prefetch = 0 : i64, scratch_operands = 0 : i64, tpu.core_type = #tpu.core_type<tc>, window_params = [{transform_indices = @transform_0, window_bounds = array<i64: 16, 80>}, {transform_indices = @transform_1, window_bounds = array<i64: 16, 80>}, {pipeline_mode = #tpu.pipeline_mode<synchronous>, transform_indices = @transform_2, window_bounds = array<i64: 64, 64>}, {pipeline_mode = #tpu.pipeline_mode<synchronous>, transform_indices = @transform_3, window_bounds = array<i64: 64, 64>}, {pipeline_mode = #tpu.pipeline_mode<synchronous>, transform_indices = @transform_4, window_bounds = array<i64: 1, 64>}, {pipeline_mode = #tpu.pipeline_mode<synchronous>, transform_indices = @transform_5, window_bounds = array<i64: 64, 32>}, {pipeline_mode = #tpu.pipeline_mode<synchronous>, transform_indices = @transform_6, window_bounds = array<i64: 1, 32>}, {pipeline_mode = #tpu.pipeline_mode<synchronous>, transform_indices = @transform_7, window_bounds = array<i64: 32, 16>}, {pipeline_mode = #tpu.pipeline_mode<synchronous>, transform_indices = @transform_8, window_bounds = array<i64: 1, 16>}, {pipeline_mode = #tpu.pipeline_mode<synchronous>, transform_indices = @transform_9, window_bounds = array<i64: 1, 16>}, {pipeline_mode = #tpu.pipeline_mode<synchronous>, transform_indices = @transform_10, window_bounds = array<i64: 1, 16>}, {pipeline_mode = #tpu.pipeline_mode<synchronous>, transform_indices = @transform_11, window_bounds = array<i64: 1, 1>}, {transform_indices = @transform_12, window_bounds = array<i64: 16, 1>}]} {
    %c0 = arith.constant 0 : index
    %c0_0 = arith.constant 0 : index
    %0 = vector.load %arg1[%c0, %c0_0] : memref<16x80xf32, #tpu.memory_space<vmem>>, vector<16x80xf32>
    %c0_1 = arith.constant 0 : index
    %c0_2 = arith.constant 0 : index
    %1 = vector.load %arg2[%c0_1, %c0_2] : memref<16x80xf32, #tpu.memory_space<vmem>>, vector<16x80xf32>
    %2 = vector.extract_strided_slice %0 {offsets = [0, 0], sizes = [16, 64], strides = [1, 1]} : vector<16x80xf32> to vector<16x64xf32>
    %3 = vector.extract_strided_slice %1 {offsets = [0, 0], sizes = [16, 64], strides = [1, 1]} : vector<16x80xf32> to vector<16x64xf32>
    %4 = vector.extract_strided_slice %0 {offsets = [0, 64], sizes = [16, 16], strides = [1, 1]} : vector<16x80xf32> to vector<16x16xf32>
    %5 = vector.extract_strided_slice %1 {offsets = [0, 64], sizes = [16, 16], strides = [1, 1]} : vector<16x80xf32> to vector<16x16xf32>
    %c0_3 = arith.constant 0 : index
    %c0_4 = arith.constant 0 : index
    %6 = vector.load %arg3[%c0_3, %c0_4] : memref<64x64xf32, #tpu.memory_space<vmem>>, vector<64x64xf32>
    %cst = arith.constant dense<0.000000e+00> : vector<16x64xf32>
    %7 = tpu.matmul %2, %6, %cst {dimension_numbers = #tpu.dot_dimension_numbers<[1], [0], [0], [1], [0, 0, 1, 1], [], []>} : vector<16x64xf32>, vector<64x64xf32>, vector<16x64xf32> -> vector<16x64xf32>
    %c0_5 = arith.constant 0 : index
    %c0_6 = arith.constant 0 : index
    %8 = vector.load %arg4[%c0_5, %c0_6] : memref<64x64xf32, #tpu.memory_space<vmem>>, vector<64x64xf32>
    %cst_7 = arith.constant dense<0.000000e+00> : vector<16x64xf32>
    %9 = tpu.matmul %3, %8, %cst_7 {dimension_numbers = #tpu.dot_dimension_numbers<[1], [0], [0], [1], [0, 0, 1, 1], [], []>} : vector<16x64xf32>, vector<64x64xf32>, vector<16x64xf32> -> vector<16x64xf32>
    %10 = arith.addf %7, %9 : vector<16x64xf32>
    %c0_8 = arith.constant 0 : index
    %c0_9 = arith.constant 0 : index
    %11 = vector.load %arg5[%c0_8, %c0_9] : memref<1x64xf32, #tpu.memory_space<vmem>>, vector<1x64xf32>
    %12 = vector.broadcast %11 : vector<1x64xf32> to vector<16x64xf32>
    %13 = arith.addf %10, %12 : vector<16x64xf32>
    %cst_10 = arith.constant 0.000000e+00 : f32
    %14 = vector.broadcast %cst_10 : f32 to vector<16x64xf32>
    %15 = arith.maximumf %13, %14 : vector<16x64xf32>
    %c0_11 = arith.constant 0 : index
    %c0_12 = arith.constant 0 : index
    %16 = vector.load %arg6[%c0_11, %c0_12] : memref<64x32xf32, #tpu.memory_space<vmem>>, vector<64x32xf32>
    %c0_13 = arith.constant 0 : index
    %c0_14 = arith.constant 0 : index
    %17 = vector.load %arg7[%c0_13, %c0_14] : memref<1x32xf32, #tpu.memory_space<vmem>>, vector<1x32xf32>
    %cst_15 = arith.constant dense<0.000000e+00> : vector<16x32xf32>
    %18 = tpu.matmul %15, %16, %cst_15 {dimension_numbers = #tpu.dot_dimension_numbers<[1], [0], [0], [1], [0, 0, 1, 1], [], []>} : vector<16x64xf32>, vector<64x32xf32>, vector<16x32xf32> -> vector<16x32xf32>
    %19 = vector.broadcast %17 : vector<1x32xf32> to vector<16x32xf32>
    %20 = arith.addf %18, %19 : vector<16x32xf32>
    %cst_16 = arith.constant 0.000000e+00 : f32
    %21 = vector.broadcast %cst_16 : f32 to vector<16x32xf32>
    %22 = arith.maximumf %20, %21 : vector<16x32xf32>
    %c0_17 = arith.constant 0 : index
    %c0_18 = arith.constant 0 : index
    %23 = vector.load %arg8[%c0_17, %c0_18] : memref<32x16xf32, #tpu.memory_space<vmem>>, vector<32x16xf32>
    %c0_19 = arith.constant 0 : index
    %c0_20 = arith.constant 0 : index
    %24 = vector.load %arg9[%c0_19, %c0_20] : memref<1x16xf32, #tpu.memory_space<vmem>>, vector<1x16xf32>
    %cst_21 = arith.constant dense<0.000000e+00> : vector<16x16xf32>
    %25 = tpu.matmul %22, %23, %cst_21 {dimension_numbers = #tpu.dot_dimension_numbers<[1], [0], [0], [1], [0, 0, 1, 1], [], []>} : vector<16x32xf32>, vector<32x16xf32>, vector<16x16xf32> -> vector<16x16xf32>
    %26 = vector.broadcast %24 : vector<1x16xf32> to vector<16x16xf32>
    %27 = arith.addf %25, %26 : vector<16x16xf32>
    %cst_22 = arith.constant 0.000000e+00 : f32
    %28 = vector.broadcast %cst_22 : f32 to vector<16x16xf32>
    %29 = arith.maximumf %27, %28 : vector<16x16xf32>
    %30 = arith.mulf %4, %5 : vector<16x16xf32>
    %c0_23 = arith.constant 0 : index
    %c0_24 = arith.constant 0 : index
    %31 = vector.load %arg10[%c0_23, %c0_24] : memref<1x16xf32, #tpu.memory_space<vmem>>, vector<1x16xf32>
    %c0_25 = arith.constant 0 : index
    %c0_26 = arith.constant 0 : index
    %32 = vector.load %arg11[%c0_25, %c0_26] : memref<1x16xf32, #tpu.memory_space<vmem>>, vector<1x16xf32>
    %33 = vector.broadcast %31 : vector<1x16xf32> to vector<16x16xf32>
    %34 = arith.mulf %29, %33 : vector<16x16xf32>
    %35 = vector.broadcast %32 : vector<1x16xf32> to vector<16x16xf32>
    %36 = arith.mulf %30, %35 : vector<16x16xf32>
    %37 = arith.addf %34, %36 : vector<16x16xf32>
    %cst_27 = arith.constant dense<0.000000e+00> : vector<16xf32>
    %38 = vector.multi_reduction <add>, %37, %cst_27 [1] : vector<16x16xf32> to vector<16xf32>
    %39 = vector.shape_cast %38 : vector<16xf32> to vector<16x1xf32>
    %c0_28 = arith.constant 0 : index
    %c0_29 = arith.constant 0 : index
    %40 = vector.load %arg12[%c0_28, %c0_29] : memref<1x1xf32, #tpu.memory_space<vmem>>, vector<1x1xf32>
    %41 = vector.broadcast %40 : vector<1x1xf32> to vector<16x1xf32>
    %42 = arith.addf %39, %41 : vector<16x1xf32>
    %c0_30 = arith.constant 0 : index
    %c0_31 = arith.constant 0 : index
    %43 = vector.load %arg13[%c0_30, %c0_31] : memref<16x1xf32, #tpu.memory_space<vmem>>, vector<16x1xf32>
    tpu.vector_store %arg13[%c0_30, %c0_31], %42 {strides = array<i32>} : memref<16x1xf32, #tpu.memory_space<vmem>>, vector<16x1xf32>,
    return
  }
  func.func @transform_0(%arg0: i32) -> (i32, i32) {
    %c0_i32 = arith.constant 0 : i32
    %c0_i32_0 = arith.constant 0 : i32
    return %arg0, %c0_i32 : i32, i32
  }
  func.func @transform_1(%arg0: i32) -> (i32, i32) {
    %c0_i32 = arith.constant 0 : i32
    %c0_i32_0 = arith.constant 0 : i32
    return %arg0, %c0_i32 : i32, i32
  }
  func.func @transform_2(%arg0: i32) -> (i32, i32) {
    %c0_i32 = arith.constant 0 : i32
    %c0_i32_0 = arith.constant 0 : i32
    %c0_i32_1 = arith.constant 0 : i32
    return %c0_i32, %c0_i32_0 : i32, i32
  }
  func.func @transform_3(%arg0: i32) -> (i32, i32) {
    %c0_i32 = arith.constant 0 : i32
    %c0_i32_0 = arith.constant 0 : i32
    %c0_i32_1 = arith.constant 0 : i32
    return %c0_i32, %c0_i32_0 : i32, i32
  }
  func.func @transform_4(%arg0: i32) -> (i32, i32) {
    %c0_i32 = arith.constant 0 : i32
    %c0_i32_0 = arith.constant 0 : i32
    %c0_i32_1 = arith.constant 0 : i32
    return %c0_i32, %c0_i32_0 : i32, i32
  }
  func.func @transform_5(%arg0: i32) -> (i32, i32) {
    %c0_i32 = arith.constant 0 : i32
    %c0_i32_0 = arith.constant 0 : i32
    %c0_i32_1 = arith.constant 0 : i32
    return %c0_i32, %c0_i32_0 : i32, i32
  }
  func.func @transform_6(%arg0: i32) -> (i32, i32) {
    %c0_i32 = arith.constant 0 : i32
    %c0_i32_0 = arith.constant 0 : i32
    %c0_i32_1 = arith.constant 0 : i32
    return %c0_i32, %c0_i32_0 : i32, i32
  }
  func.func @transform_7(%arg0: i32) -> (i32, i32) {
    %c0_i32 = arith.constant 0 : i32
    %c0_i32_0 = arith.constant 0 : i32
    %c0_i32_1 = arith.constant 0 : i32
    return %c0_i32, %c0_i32_0 : i32, i32
  }
  func.func @transform_8(%arg0: i32) -> (i32, i32) {
    %c0_i32 = arith.constant 0 : i32
    %c0_i32_0 = arith.constant 0 : i32
    %c0_i32_1 = arith.constant 0 : i32
    return %c0_i32, %c0_i32_0 : i32, i32
  }
  func.func @transform_9(%arg0: i32) -> (i32, i32) {
    %c0_i32 = arith.constant 0 : i32
    %c0_i32_0 = arith.constant 0 : i32
    %c0_i32_1 = arith.constant 0 : i32
    return %c0_i32, %c0_i32_0 : i32, i32
  }
  func.func @transform_10(%arg0: i32) -> (i32, i32) {
    %c0_i32 = arith.constant 0 : i32
    %c0_i32_0 = arith.constant 0 : i32
    %c0_i32_1 = arith.constant 0 : i32
    return %c0_i32, %c0_i32_0 : i32, i32
  }
  func.func @transform_11(%arg0: i32) -> (i32, i32) {
    %c0_i32 = arith.constant 0 : i32
    %c0_i32_0 = arith.constant 0 : i32
    %c0_i32_1 = arith.constant 0 : i32
    return %c0_i32, %c0_i32_0 : i32, i32
  }
  func.func @transform_12(%arg0: i32) -> (i32, i32) {
    %c0_i32 = arith.constant 0 : i32
    %c0_i32_0 = arith.constant 0 : i32
    return %arg0, %c0_i32 : i32, i32
  }
}

</mosaic_0001>

<llo_original>
// kernel: ncf_forward.1
$region0: #{ncf_forward.1}
  #allocation0 [shape = 'u32[]', space=smem, size = 0x4, offset = 0x4, fixed_abs, tag = 'smem constant byte address 0x4 - core index']
  #allocation1 [shape = 'u32[72,128]{1,0:T(1,128)}', space=vmem, size = 0x9000, scoped, tag = 'internal scratch']
  #allocation2 [shape = 'f32[1,1]{1,0:T(1,128)S(1)}', space=vmem, size = 0x200, scoped, tag = 'scoped memory for ncf_forward.1']
  %s0 = inlined_call_operand.vmem [shape: f32[16,80], index: 0, kind: input, shape index: {}]
  %s1 = inlined_call_operand.vmem [shape: f32[16,80], index: 1, kind: input, shape index: {}]
  %s2 = inlined_call_operand.vmem [shape: f32[64,64], index: 2, kind: input, shape index: {}]
  %s3 = inlined_call_operand.vmem [shape: f32[64,64], index: 3, kind: input, shape index: {}]
  %s4 = inlined_call_operand.vmem [shape: f32[1,64], index: 4, kind: input, shape index: {}]
  %s5 = inlined_call_operand.vmem [shape: f32[64,32], index: 5, kind: input, shape index: {}]
  %s6 = inlined_call_operand.vmem [shape: f32[1,32], index: 6, kind: input, shape index: {}]
  %s7 = inlined_call_operand.vmem [shape: f32[32,16], index: 7, kind: input, shape index: {}]
  %s8 = inlined_call_operand.vmem [shape: f32[1,16], index: 8, kind: input, shape index: {}]
  %s9 = inlined_call_operand.vmem [shape: f32[1,16], index: 9, kind: input, shape index: {}]
  %s10 = inlined_call_operand.vmem [shape: f32[1,16], index: 10, kind: input, shape index: {}]
  %s11 = inlined_call_operand.<no memory space> [shape: f32[1,1], index: 11, kind: input, shape index: {}]
  %s12 = inlined_call_operand.vmem [shape: f32[16,1], index: 12, kind: output, shape index: {}]
  %s13 = sld [smem:[#allocation0]]
  $region58: #{ncf_forward.1} parent=0
    _
  %s15 = ssub.s32 1, %s13
  %s16 = scalar_select 0, %s15, %s13
  %v17 = vstv %s11
  %18 = vst [vmem:[#allocation2] sm:$0x1] %v17
  // Predicated region
  $region2: #{ncf_forward.1} parent=0 // pred_check
    _
  $region3: #{ncf_forward.1} parent=0 // pred_check_branch
    %20 = sbr.rel (0) target = $region5
  $region4: #{ncf_forward.1} parent=0 // pred_region
    _
  $region5: #{ncf_forward.1} parent=0 // pred_fallthru
    _
  // Predicated region
  $region6: #{ncf_forward.1} parent=0 // pred_check
    _
  $region7: #{ncf_forward.1} parent=0 // pred_check_branch
    %22 = sbr.rel (0) target = $region9
  $region8: #{ncf_forward.1} parent=0 // pred_region
    _
  $region9: #{ncf_forward.1} parent=0 // pred_fallthru
    _
  // Predicated region
  $region10: #{ncf_forward.1} parent=0 // pred_check
    _
  $region11: #{ncf_forward.1} parent=0 // pred_check_branch
    %24 = sbr.rel (0) target = $region13
  $region12: #{ncf_forward.1} parent=0 // pred_region
    _
  $region13: #{ncf_forward.1} parent=0 // pred_fallthru
    _
  // Predicated region
  $region14: #{ncf_forward.1} parent=0 // pred_check
    _
  $region15: #{ncf_forward.1} parent=0 // pred_check_branch
    %26 = sbr.rel (0) target = $region17
  $region16: #{ncf_forward.1} parent=0 // pred_region
    _
  $region17: #{ncf_forward.1} parent=0 // pred_fallthru
    _
  // Predicated region
  $region18: #{ncf_forward.1} parent=0 // pred_check
    _
  $region19: #{ncf_forward.1} parent=0 // pred_check_branch
    %28 = sbr.rel (0) target = $region21
  $region20: #{ncf_forward.1} parent=0 // pred_region
    _
  $region21: #{ncf_forward.1} parent=0 // pred_fallthru
    _
  // Predicated region
  $region22: #{ncf_forward.1} parent=0 // pred_check
    _
  $region23: #{ncf_forward.1} parent=0 // pred_check_branch
    %30 = sbr.rel (0) target = $region25
  $region24: #{ncf_forward.1} parent=0 // pred_region
    _
  $region25: #{ncf_forward.1} parent=0 // pred_fallthru
    _
  // Predicated region
  $region26: #{ncf_forward.1} parent=0 // pred_check
    _
  $region27: #{ncf_forward.1} parent=0 // pred_check_branch
    %32 = sbr.rel (0) target = $region29
  $region28: #{ncf_forward.1} parent=0 // pred_region
    _
  $region29: #{ncf_forward.1} parent=0 // pred_fallthru
    _
  // Predicated region
  $region30: #{ncf_forward.1} parent=0 // pred_check
    _
  $region31: #{ncf_forward.1} parent=0 // pred_check_branch
    %34 = sbr.rel (0) target = $region33
  $region32: #{ncf_forward.1} parent=0 // pred_region
    _
  $region33: #{ncf_forward.1} parent=0 // pred_fallthru
    _
  // Predicated region
  $region34: #{ncf_forward.1} parent=0 // pred_check
    _
  $region35: #{ncf_forward.1} parent=0 // pred_check_branch
    %36 = sbr.rel (0) target = $region37
  $region36: #{ncf_forward.1} parent=0 // pred_region
    _
  $region37: #{ncf_forward.1} parent=0 // pred_fallthru
    _
  // Predicated region
  $region38: #{ncf_forward.1} parent=0 // pred_check
    _
  $region39: #{ncf_forward.1} parent=0 // pred_check_branch
    %38 = sbr.rel (0) target = $region41
  $region40: #{ncf_forward.1} parent=0 // pred_region
    _
  $region41: #{ncf_forward.1} parent=0 // pred_fallthru
    _
  // Predicated region
  $region42: #{ncf_forward.1} parent=0 // pred_check
    _
  $region43: #{ncf_forward.1} parent=0 // pred_check_branch
    %40 = sbr.rel (0) target = $region45
  $region44: #{ncf_forward.1} parent=0 // pred_region
    _
  $region45: #{ncf_forward.1} parent=0 // pred_fallthru
    _
  // Predicated region
  $region46: #{ncf_forward.1} parent=0 // pred_check
    _
  $region47: #{ncf_forward.1} parent=0 // pred_check_branch
    %42 = sbr.rel (0) target = $region49
  $region48: #{ncf_forward.1} parent=0 // pred_region
    _
  $region49: #{ncf_forward.1} parent=0 // pred_fallthru
    _
  %v43 = vld [vmem:[%s0] sm:$0xff]
  %v44 = vld [vmem:[%s0 + $0x8] sm:$0xff]
  %v45 = vld [vmem:[%s1] sm:$0xff]
  %v46 = vld [vmem:[%s1 + $0x8] sm:$0xff]
  %v47 = vld [vmem:[%s2] sm:$0xff]
  %v48 = vld [vmem:[%s2 + $0x8] sm:$0xff]
  %v49 = vld [vmem:[%s2 + $0x10] sm:$0xff]
  %v50 = vld [vmem:[%s2 + $0x18] sm:$0xff]
  %v51 = vld [vmem:[%s2 + $0x20] sm:$0xff]
  %v52 = vld [vmem:[%s2 + $0x28] sm:$0xff]
  %v53 = vld [vmem:[%s2 + $0x30] sm:$0xff]
  %v54 = vld [vmem:[%s2 + $0x38] sm:$0xff]
  %v55 = vld [vmem:[%s3] sm:$0xff]
  %v56 = vld [vmem:[%s3 + $0x8] sm:$0xff]
  %v57 = vld [vmem:[%s3 + $0x10] sm:$0xff]
  %v58 = vld [vmem:[%s3 + $0x18] sm:$0xff]
  %v59 = vld [vmem:[%s3 + $0x20] sm:$0xff]
  %v60 = vld [vmem:[%s3 + $0x28] sm:$0xff]
  %v61 = vld [vmem:[%s3 + $0x30] sm:$0xff]
  %v62 = vld [vmem:[%s3 + $0x38] sm:$0xff]
  %vm63 = vcmask 523264
  %v65 = vsel %vm63, %v45, 0
  %v68 = vsel %vm63, %v46, 0
  %70 = vmatpush.msra.mxu0 0.0
  %71 = vmatpush.msra.mxu0 0.0
  %72 = vmatpush.msra.mxu0 0.0
  %73 = vmatpush.msra.mxu0 0.0
  %74 = vmatpush.msra.mxu0 0.0
  %75 = vmatpush.msra.mxu0 0.0
  %76 = vmatpush.msra.mxu0 0.0
  %77 = vmatpush.msra.mxu0 0.0
  %78 = vmatpush.msra.mxu0 %v62
  %79 = vmatpush.msra.mxu0 %v61
  %80 = vmatpush.msra.mxu0 %v60
  %81 = vmatpush.msra.mxu0 %v59
  %82 = vmatpush.msra.mxu0 %v58
  %83 = vmatpush.msra.mxu0 %v57
  %84 = vmatpush.msra.mxu0 %v56
  %85 = vmatpush.msra.mxu0 %v55
  %86 = vmatmul.f32.gmra.mxu0 %v65
  %v87 = vpop.f32.mrf.mxu0
  %v88 = vadd.f32 0.0, %v87
  %89 = vmatmul.f32.gmra.mxu0 %v68
  %v90 = vpop.f32.mrf.mxu0
  %v91 = vadd.f32 0.0, %v90
  %92 = vdwg.mxu0
  %v94 = vsel %vm63, %v43, 0
  %v97 = vsel %vm63, %v44, 0
  %99 = vmatpush.msra.mxu0 0.0
  %100 = vmatpush.msra.mxu0 0.0
  %101 = vmatpush.msra.mxu0 0.0
  %102 = vmatpush.msra.mxu0 0.0
  %103 = vmatpush.msra.mxu0 0.0
  %104 = vmatpush.msra.mxu0 0.0
  %105 = vmatpush.msra.mxu0 0.0
  %106 = vmatpush.msra.mxu0 0.0
  %107 = vmatpush.msra.mxu0 %v54
  %108 = vmatpush.msra.mxu0 %v53
  %109 = vmatpush.msra.mxu0 %v52
  %110 = vmatpush.msra.mxu0 %v51
  %111 = vmatpush.msra.mxu0 %v50
  %112 = vmatpush.msra.mxu0 %v49
  %113 = vmatpush.msra.mxu0 %v48
  %114 = vmatpush.msra.mxu0 %v47
  %115 = vmatmul.f32.gmra.mxu0 %v94
  %v116 = vpop.f32.mrf.mxu0
  %v117 = vadd.f32 %v88, %v116
  %118 = vmatmul.f32.gmra.mxu0 %v97
  %v119 = vpop.f32.mrf.mxu0
  %v120 = vadd.f32 %v91, %v119
  %121 = vdwg.mxu0
  %v122 = vld [vmem:[%s4] sm:$0x1]
  %v124 = vperm.slane %v122, 0
  %v126 = vadd.f32 %v117, %v124
  %v127 = vadd.f32 %v120, %v124
  %v128 = vmax.f32 %v126, 0.0
  %v129 = vmax.f32 %v127, 0.0
  %v130 = vld [vmem:[%s5] sm:$0xff]
  %v131 = vld [vmem:[%s5 + $0x8] sm:$0xff]
  %v132 = vld [vmem:[%s5 + $0x10] sm:$0xff]
  %v133 = vld [vmem:[%s5 + $0x18] sm:$0xff]
  %v134 = vld [vmem:[%s5 + $0x20] sm:$0xff]
  %v135 = vld [vmem:[%s5 + $0x28] sm:$0xff]
  %v136 = vld [vmem:[%s5 + $0x30] sm:$0xff]
  %v137 = vld [vmem:[%s5 + $0x38] sm:$0xff]
  %v138 = vld [vmem:[%s6] sm:$0x1]
  %v140 = vperm.slane %v138, 0
  %v143 = vsel %vm63, %v128, 0
  %v146 = vsel %vm63, %v129, 0
  %148 = vmatpush.msra.mxu0 0.0
  %149 = vmatpush.msra.mxu0 0.0
  %150 = vmatpush.msra.mxu0 0.0
  %151 = vmatpush.msra.mxu0 0.0
  %152 = vmatpush.msra.mxu0 0.0
  %153 = vmatpush.msra.mxu0 0.0
  %154 = vmatpush.msra.mxu0 0.0
  %155 = vmatpush.msra.mxu0 0.0
  %156 = vmatpush.msra.mxu0 %v137
  %157 = vmatpush.msra.mxu0 %v136
  %158 = vmatpush.msra.mxu0 %v135
  %159 = vmatpush.msra.mxu0 %v134
  %160 = vmatpush.msra.mxu0 %v133
  %161 = vmatpush.msra.mxu0 %v132
  %162 = vmatpush.msra.mxu0 %v131
  %163 = vmatpush.msra.mxu0 %v130
  %164 = vmatmul.f32.gmra.mxu0 %v143
  %v165 = vpop.f32.mrf.mxu0
  %v166 = vadd.f32 %v140, %v165
  %167 = vmatmul.f32.gmra.mxu0 %v146
  %v168 = vpop.f32.mrf.mxu0
  %v169 = vadd.f32 %v140, %v168
  %170 = vdwg.mxu0
  %v171 = vmax.f32 %v166, 0.0
  %v172 = vmax.f32 %v169, 0.0
  %v173 = vld [vmem:[%s7] sm:$0xff]
  %v174 = vld [vmem:[%s7 + $0x8] sm:$0xff]
  %v175 = vld [vmem:[%s7 + $0x10] sm:$0xff]
  %v176 = vld [vmem:[%s7 + $0x18] sm:$0xff]
  %v177 = vld [vmem:[%s8] sm:$0x1]
  %v179 = vperm.slane %v177, 0
  %vm181 = vcmask 261120
  %v183 = vsel %vm181, %v171, 0
  %v186 = vsel %vm181, %v172, 0
  %188 = vmatpush.msra.mxu0 0.0
  %189 = vmatpush.msra.mxu0 0.0
  %190 = vmatpush.msra.mxu0 0.0
  %191 = vmatpush.msra.mxu0 0.0
  %192 = vmatpush.msra.mxu0 0.0
  %193 = vmatpush.msra.mxu0 0.0
  %194 = vmatpush.msra.mxu0 0.0
  %195 = vmatpush.msra.mxu0 0.0
  %196 = vmatpush.msra.mxu0 0.0
  %197 = vmatpush.msra.mxu0 0.0
  %198 = vmatpush.msra.mxu0 0.0
  %199 = vmatpush.msra.mxu0 0.0
  %200 = vmatpush.msra.mxu0 %v176
  %201 = vmatpush.msra.mxu0 %v175
  %202 = vmatpush.msra.mxu0 %v174
  %203 = vmatpush.msra.mxu0 %v173
  %204 = vmatmul.f32.gmra.mxu0 %v183
  %v205 = vpop.f32.mrf.mxu0
  %v206 = vadd.f32 %v179, %v205
  %207 = vmatmul.f32.gmra.mxu0 %v186
  %v208 = vpop.f32.mrf.mxu0
  %v209 = vadd.f32 %v179, %v208
  %210 = vdwg.mxu0
  %v211 = vmax.f32 %v206, 0.0
  %v212 = vmax.f32 %v209, 0.0
  %v213 = vmul.f32 %v43, %v45
  %v214 = vmul.f32 %v44, %v46
  %v215 = vld [vmem:[%s9] sm:$0x1]
  %v216 = vld [vmem:[%s10] sm:$0x1]
  %v218 = vperm.slane %v215, 0
  %v220 = vmul.f32 %v211, %v218
  %v221 = vmul.f32 %v212, %v218
  %v223 = vperm.slane %v216, 0
  %224 = vrot.lane.b32.xlu0 %v223, 64
  %v225 = vpop.permute.xlu0 %224
  %v227 = vmul.f32 %v213, %v225
  %v228 = vmul.f32 %v214, %v225
  %231 = vrot.lane.b32.xlu0 %v227, 64
  %v232 = vpop.permute.xlu0 %231
  %233 = vrot.lane.b32.xlu0 %v228, 64
  %v234 = vpop.permute.xlu0 %233
  %v237 = vadd.f32 %v220, %v232
  %v238 = vadd.f32 %v221, %v234
  %vm239 = vcmask 130048
  %v240 = vsel %vm239, %v237, 0.0
  %241 = vadd.xlane.f32.xlu0 %v240
  %v242 = vpop.xlane.xlu0 %241
  %v243 = vsel %vm239, %v238, 0.0
  %244 = vadd.xlane.f32.xlu0 %v243
  %v245 = vpop.xlane.xlu0 %244
  %v246 = vld [vmem:[#allocation2] sm:$0x1]
  %v248 = vperm.slane %v246, 0
  %v250 = vadd.f32 %v242, %v248
  %v251 = vadd.f32 %v245, %v248
  %vm252 = vcmask 7168
  %253 = vst.msk [vmem:[%s12] sm:$0xff] %vm252, %v250
  %254 = vst.msk [vmem:[%s12 + $0x8] sm:$0xff] %vm252, %v251
  // Predicated region
  $region50: #{ncf_forward.1} parent=0 // pred_check
    _
  $region51: #{ncf_forward.1} parent=0 // pred_check_branch
    %256 = sbr.rel (0) target = $region53
  $region52: #{ncf_forward.1} parent=0 // pred_region
    _
  $region53: #{ncf_forward.1} parent=0 // pred_fallthru
    _
  // Predicated region
  $region54: #{ncf_forward.1} parent=0 // pred_check
    _
  $region55: #{ncf_forward.1} parent=0 // pred_check_branch
    %258 = sbr.rel (0) target = $region57
  $region56: #{ncf_forward.1} parent=0 // pred_region
    _
  $region57: #{ncf_forward.1} parent=0 // pred_fallthru
    _

</llo_original>
